<compile_context>
chip_gen: v6e
topology: v6e:2x2x1
jax: 0.10.0
libtpu: 0.0.40
codegen_flags: <defaults>
</compile_context>

<pallas_src>
import jax
import jax.numpy as jnp
from jax.experimental import pallas as pl
from jax.experimental.pallas import tpu as pltpu

DELTA = 2.0
HINGE_LAMBDA = 0.2
HINGE_LOSS_ENABLE = True  # module hard-codes True; hinge always computed
NUM_CLASSES = 101

MAX_TILE_N = 2048   # ~800 KiB f32 logits / tile; x2 buffers is trivial for VMEM
MIN_SPLIT_N = 512   # below this a single tile is cheaper than paying step overhead


def _make_loss_kernel(n_rows, tile_n, num_tiles):
    """Per-tile kernel; n_rows / tile_n / num_tiles are static."""
    full_tiles_only = (num_tiles * tile_n == n_rows)

    def kernel(logits_ref, targets_ref, out_ref):
        pid = pl.program_id(0)

        x = logits_ref[...].astype(jnp.float32)      # [T, C] native dtype -> f32
        t = targets_ref[...]                         # [T, 1] int32
        T, C = x.shape

        # class-index iota shared by the one-hot pick and the hinge sign
        col = jax.lax.broadcasted_iota(jnp.int32, (T, C), 1)

        # row-validity mask only when the last tile is partial (static choice)
        if full_tiles_only:
            valid = None
            n_valid_f = jnp.float32(tile_n)
        else:
            row = jax.lax.broadcasted_iota(jnp.int32, (T, 1), 0) + pid * tile_n
            valid = row < n_rows                     # [T, 1] bool
            n_valid_f = jnp.minimum(tile_n, n_rows - pid * tile_n).astype(jnp.float32)

        # ------------- cross entropy (sum; mean taken in the wrapper) -------------
        m = jnp.max(x, axis=1, keepdims=True)        # lane reduce #1 (unavoidable)
        z = x - m                                    # [T, C]
        lse = jnp.log(jnp.sum(jnp.exp(z), axis=1, keepdims=True))  # lane reduce #2

        tgt_z = jnp.where(col == t, z, 0.0)          # one-hot pick of z at target
        if valid is None:
            ce_partial = jnp.sum(lse) - jnp.sum(tgt_z)
        else:
            ce_partial = (jnp.sum(jnp.where(valid, lse, 0.0))
                          - jnp.sum(jnp.where(valid, tgt_z, 0.0)))

        # ------------- hinge loss -------------
        # (x_j - x_{j+1}) == (z_j - z_{j+1}); the duplicated last column of the
        # PyTorch version always yields max(DELTA, 0) == DELTA per row.
        cs = C - 1
        d = z[:, :cs] - z[:, 1:]                     # single lane-shifted slice
        sign = jnp.where(col[:, :cs] >= t, -1.0, 1.0)
        h = jnp.maximum(d * sign + DELTA, 0.0)
        if valid is None:
            h_sum = jnp.sum(h)
        else:
            h_sum = jnp.sum(jnp.where(valid, h, 0.0))
        hinge_partial = h_sum + DELTA * n_valid_f

        # lane-dense partial-sum row: lane 0 = CE sum, lane 1 = hinge sum
        lane = jax.lax.broadcasted_iota(jnp.int32, (1, 128), 1)
        out_ref[0] = jnp.where(lane == 0, ce_partial,
                               jnp.where(lane == 1, hinge_partial, 0.0))

    return kernel


@jax.jit
def loss_func(logits, targets):
    """Returns (total_loss, softmax_loss, HINGE_LAMBDA * hinge_loss)."""
    N, C = logits.shape

    # Tile selection:
    #   * small N: one full-batch tile (block dim == full dim, any N allowed)
    #   * large N: at least 2 tiles (v7x megacore), multiple of 8, capped at 2048
    if N < MIN_SPLIT_N:
        tile_n = N
    else:
        half = -(-N // 2)                      # ceil(N / 2)
        tile_n = min(MAX_TILE_N, -(-half // 8) * 8)
    num_tiles = -(-N // tile_n)

    t2 = targets.astype(jnp.int32).reshape(N, 1)

    bytes_accessed = (N * C * jnp.dtype(logits.dtype).itemsize   # logits read
                      + N * 4                                    # targets read
                      + num_tiles * 128 * 4)                     # partials write

    partials = pl.pallas_call(
        _make_loss_kernel(N, tile_n, num_tiles),
        grid=(num_tiles,),
        in_specs=[
            pl.BlockSpec((tile_n, C), lambda i: (i, 0)),
            pl.BlockSpec((tile_n, 1), lambda i: (i, 0)),
        ],
        out_specs=pl.BlockSpec((1, 1, 128), lambda i: (i, 0, 0)),
        out_shape=jax.ShapeDtypeStruct((num_tiles, 1, 128), jnp.float32),
        compiler_params=pltpu.CompilerParams(
            dimension_semantics=("parallel",)),
        cost_estimate=pl.CostEstimate(
            flops=12 * N * C,
            transcendentals=N * (C + 1),
            bytes_accessed=int(bytes_accessed)),
    )(logits, t2)

    ce_sum = jnp.sum(partials[:, 0, 0])
    hinge_sum = jnp.sum(partials[:, 0, 1])

    inv_n = 1.0 / N
    softmax_loss = ce_sum * inv_n
    hinge_scaled = (HINGE_LAMBDA * inv_n) * hinge_sum
    return softmax_loss + hinge_scaled, softmax_loss, hinge_scaled


def _reference(logits, targets):
    # plain-JAX reference mirroring the PyTorch module
    x = logits.astype(jnp.float32)
    N, C = x.shape
    logp = jax.nn.log_softmax(x, axis=1)
    softmax_loss = -jnp.mean(logp[jnp.arange(N), targets])
    col = jnp.arange(C)[None, :]
    sign = jnp.where(col >= targets[:, None], -1.0, 1.0)
    x_move = jnp.concatenate([x[:, 1:], x[:, -1:]], axis=1)
    hinge = jnp.maximum((x - x_move) * sign + DELTA, 0.0)
    hinge_loss = jnp.mean(jnp.sum(hinge, axis=1))
    hl = HINGE_LAMBDA * hinge_loss
    return softmax_loss + hl, softmax_loss, hl


def _check(logits, targets, rtol=1e-5, atol=1e-3):
    total, ce, hinge = loss_func(logits, targets)
    jax.block_until_ready((total, ce, hinge))
    ref_total, ref_ce, ref_hinge = _reference(logits, targets)
    assert jnp.allclose(total, ref_total, rtol=rtol, atol=atol)
    assert jnp.allclose(ce, ref_ce, rtol=rtol, atol=atol)
    assert jnp.allclose(hinge, ref_hinge, rtol=rtol, atol=atol)


if __name__ == "__main__":
    key = jax.random.PRNGKey(0)
    k1, k2, k3, k4 = jax.random.split(key, 4)

    # small single-tile case (class dim fixed at 101 by the module)
    N_small = 8
    logits_s = jax.random.normal(k1, (N_small, NUM_CLASSES), dtype=jnp.float32)
    targets_s = jax.random.randint(k2, (N_small,), 0, NUM_CLASSES, dtype=jnp.int32)
    _check(logits_s, targets_s)

    # two-tile case with a partial last tile (exercises grid + row masking)
    N_big = 537  # -> tile_n = 272, tiles = 2 (272 + 265 masked)
    logits_b = jax.random.normal(k3, (N_big, NUM_CLASSES), dtype=jnp.float32)
    targets_b = jax.random.randint(k4, (N_big,), 0, NUM_CLASSES, dtype=jnp.int32)
    _check(logits_b, targets_b)

    print("KERNEL_OK")
</pallas_src>

<mosaic_0001>
module attributes {stable_mosaic.version = 11 : i64} {
  func.func @kernel(%arg0: i32, %arg1: memref<8x101xf32, #tpu.memory_space<vmem>>, %arg2: memref<8x1xi32, #tpu.memory_space<vmem>>, %arg3: memref<1x1x128xf32, #tpu.memory_space<vmem>>) attributes {dimension_semantics = [#tpu.dimension_semantics<parallel>], iteration_bounds = array<i64: 1>, scalar_prefetch = 0 : i64, scratch_operands = 0 : i64, tpu.core_type = #tpu.core_type<tc>, window_params = [{transform_indices = @transform_0, window_bounds = array<i64: 8, 101>}, {transform_indices = @transform_1, window_bounds = array<i64: 8, 1>}, {transform_indices = @transform_2, window_bounds = array<i64: 1, 1, 128>}]} {
    %c0 = arith.constant 0 : index
    %c0_0 = arith.constant 0 : index
    %0 = vector.load %arg1[%c0, %c0_0] : memref<8x101xf32, #tpu.memory_space<vmem>>, vector<8x101xf32>
    %c0_1 = arith.constant 0 : index
    %c0_2 = arith.constant 0 : index
    %1 = vector.load %arg2[%c0_1, %c0_2] : memref<8x1xi32, #tpu.memory_space<vmem>>, vector<8x1xi32>
    %2 = tpu.iota {dimensions = array<i32: 1>} : vector<8x101xi32>
    %cst = arith.constant dense<0xFF800000> : vector<8xf32>
    %3 = vector.multi_reduction <maximumf>, %0, %cst [1] : vector<8x101xf32> to vector<8xf32>
    %4 = vector.shape_cast %3 : vector<8xf32> to vector<8x1xf32>
    %5 = vector.broadcast %4 : vector<8x1xf32> to vector<8x101xf32>
    %6 = arith.subf %0, %5 : vector<8x101xf32>
    %7 = math.exp %6 : vector<8x101xf32>
    %cst_3 = arith.constant dense<0.000000e+00> : vector<8xf32>
    %8 = vector.multi_reduction <add>, %7, %cst_3 [1] : vector<8x101xf32> to vector<8xf32>
    %9 = vector.shape_cast %8 : vector<8xf32> to vector<8x1xf32>
    %10 = math.log %9 : vector<8x1xf32>
    %11 = vector.broadcast %1 : vector<8x1xi32> to vector<8x101xi32>
    %12 = arith.cmpi eq, %2, %11 : vector<8x101xi32>
    %cst_4 = arith.constant 0.000000e+00 : f32
    %13 = vector.broadcast %cst_4 : f32 to vector<8x101xf32>
    %14 = arith.select %12, %6, %13 : vector<8x101xi1>, vector<8x101xf32>
    %15 = vector.shape_cast %10 : vector<8x1xf32> to vector<1x8x1xf32>
    %cst_5 = arith.constant dense<0.000000e+00> : vector<1xf32>
    %16 = vector.multi_reduction <add>, %15, %cst_5 [1, 2] : vector<1x8x1xf32> to vector<1xf32>
    %17 = vector.shape_cast %16 : vector<1xf32> to vector<1x1x1xf32>
    %18 = vector.extract %17[0, 0, 0] : f32 from vector<1x1x1xf32>
    %19 = vector.shape_cast %14 : vector<8x101xf32> to vector<1x8x101xf32>
    %cst_6 = arith.constant dense<0.000000e+00> : vector<1xf32>
    %20 = vector.multi_reduction <add>, %19, %cst_6 [1, 2] : vector<1x8x101xf32> to vector<1xf32>
    %21 = vector.shape_cast %20 : vector<1xf32> to vector<1x1x1xf32>
    %22 = vector.extract %21[0, 0, 0] : f32 from vector<1x1x1xf32>
    %23 = arith.subf %18, %22 : f32
    %24 = vector.extract_strided_slice %6 {offsets = [0, 0], sizes = [8, 100], strides = [1, 1]} : vector<8x101xf32> to vector<8x100xf32>
    %25 = vector.extract_strided_slice %6 {offsets = [0, 1], sizes = [8, 100], strides = [1, 1]} : vector<8x101xf32> to vector<8x100xf32>
    %26 = arith.subf %24, %25 : vector<8x100xf32>
    %27 = vector.extract_strided_slice %2 {offsets = [0, 0], sizes = [8, 100], strides = [1, 1]} : vector<8x101xi32> to vector<8x100xi32>
    %28 = vector.broadcast %1 : vector<8x1xi32> to vector<8x100xi32>
    %29 = arith.cmpi sge, %27, %28 : vector<8x100xi32>
    %cst_7 = arith.constant -1.000000e+00 : f32
    %cst_8 = arith.constant 1.000000e+00 : f32
    %30 = vector.broadcast %cst_7 : f32 to vector<8x100xf32>
    %31 = vector.broadcast %cst_8 : f32 to vector<8x100xf32>
    %32 = arith.select %29, %30, %31 : vector<8x100xi1>, vector<8x100xf32>
    %33 = arith.mulf %26, %32 : vector<8x100xf32>
    %cst_9 = arith.constant 2.000000e+00 : f32
    %34 = vector.broadcast %cst_9 : f32 to vector<8x100xf32>
    %35 = arith.addf %33, %34 : vector<8x100xf32>
    %cst_10 = arith.constant 0.000000e+00 : f32
    %36 = vector.broadcast %cst_10 : f32 to vector<8x100xf32>
    %37 = arith.maximumf %35, %36 : vector<8x100xf32>
    %38 = vector.shape_cast %37 : vector<8x100xf32> to vector<1x8x100xf32>
    %cst_11 = arith.constant dense<0.000000e+00> : vector<1xf32>
    %39 = vector.multi_reduction <add>, %38, %cst_11 [1, 2] : vector<1x8x100xf32> to vector<1xf32>
    %40 = vector.shape_cast %39 : vector<1xf32> to vector<1x1x1xf32>
    %41 = vector.extract %40[0, 0, 0] : f32 from vector<1x1x1xf32>
    %cst_12 = arith.constant 2.000000e+00 : f32
    %cst_13 = arith.constant 8.000000e+00 : f32
    %42 = arith.mulf %cst_12, %cst_13 : f32
    %43 = arith.addf %41, %42 : f32
    %44 = tpu.iota {dimensions = array<i32: 1>} : vector<1x128xi32>
    %c0_i32 = arith.constant 0 : i32
    %45 = vector.broadcast %c0_i32 : i32 to vector<1x128xi32>
    %46 = arith.cmpi eq, %44, %45 : vector<1x128xi32>
    %c1_i32 = arith.constant 1 : i32
    %47 = vector.broadcast %c1_i32 : i32 to vector<1x128xi32>
    %48 = arith.cmpi eq, %44, %47 : vector<1x128xi32>
    %cst_14 = arith.constant 0.000000e+00 : f32
    %49 = vector.broadcast %43 : f32 to vector<1x128xf32>
    %50 = vector.broadcast %cst_14 : f32 to vector<1x128xf32>
    %51 = arith.select %48, %49, %50 : vector<1x128xi1>, vector<1x128xf32>
    %52 = vector.broadcast %23 : f32 to vector<1x128xf32>
    %53 = arith.select %46, %52, %51 : vector<1x128xi1>, vector<1x128xf32>
    %c0_15 = arith.constant 0 : index
    %c0_16 = arith.constant 0 : index
    %c0_17 = arith.constant 0 : index
    %54 = vector.load %arg3[%c0_15, %c0_16, %c0_17] : memref<1x1x128xf32, #tpu.memory_space<vmem>>, vector<1x1x128xf32>
    %55 = vector.shape_cast %54 : vector<1x1x128xf32> to vector<1x128xf32>
    %56 = vector.shape_cast %53 : vector<1x128xf32> to vector<1x1x128xf32>
    tpu.vector_store %arg3[%c0_15, %c0_16, %c0_17], %56 {strides = array<i32>} : memref<1x1x128xf32, #tpu.memory_space<vmem>>, vector<1x1x128xf32>,
    return
  }
  func.func @transform_0(%arg0: i32) -> (i32, i32) {
    %c0_i32 = arith.constant 0 : i32
    %c0_i32_0 = arith.constant 0 : i32
    return %arg0, %c0_i32 : i32, i32
  }
  func.func @transform_1(%arg0: i32) -> (i32, i32) {
    %c0_i32 = arith.constant 0 : i32
    %c0_i32_0 = arith.constant 0 : i32
    return %arg0, %c0_i32 : i32, i32
  }
  func.func @transform_2(%arg0: i32) -> (i32, i32, i32) {
    %c0_i32 = arith.constant 0 : i32
    %c0_i32_0 = arith.constant 0 : i32
    %c0_i32_1 = arith.constant 0 : i32
    return %arg0, %c0_i32, %c0_i32_0 : i32, i32, i32
  }
}

</mosaic_0001>

<llo_original>
// kernel: loss_func.1
$region0: #{loss_func.1}
  #allocation0 [shape = 'u32[]', space=smem, size = 0x4, offset = 0x4, fixed_abs, tag = 'smem constant byte address 0x4 - core index']
  #allocation1 [shape = 'u32[144,128]{1,0:T(1,128)}', space=vmem, size = 0x12000, scoped, tag = 'internal scratch']
  %s0 = inlined_call_operand.vmem [shape: f32[8,101], index: 0, kind: input, shape index: {}]
  %s1 = inlined_call_operand.vmem [shape: s32[8,1], index: 1, kind: input, shape index: {}]
  %s2 = inlined_call_operand.vmem [shape: f32[1,1,128], index: 2, kind: output, shape index: {}]
  %s3 = sld [smem:[#allocation0]]
  $region18: #{loss_func.1} parent=0
    _
  %s5 = ssub.s32 1, %s3
  %s6 = scalar_select 0, %s5, %s3
  // Predicated region
  $region2: #{loss_func.1} parent=0 // pred_check
    _
  $region3: #{loss_func.1} parent=0 // pred_check_branch
    %8 = sbr.rel (0) target = $region5
  $region4: #{loss_func.1} parent=0 // pred_region
    _
  $region5: #{loss_func.1} parent=0 // pred_fallthru
    _
  // Predicated region
  $region6: #{loss_func.1} parent=0 // pred_check
    _
  $region7: #{loss_func.1} parent=0 // pred_check_branch
    %10 = sbr.rel (0) target = $region9
  $region8: #{loss_func.1} parent=0 // pred_region
    _
  $region9: #{loss_func.1} parent=0 // pred_fallthru
    _
  %v11 = vld [vmem:[%s0] sm:$0xff]
  %v12 = vld [vmem:[%s1] sm:$0xff]
  %v13 = vlaneseq
  %v14 = vand.u32 %v13, 127
  %vm15 = vcmask 826368
  %v16 = vsel %vm15, %v11, -inf
  %17 = vmax.xlane.f32.xlu0 %v16
  %v18 = vpop.xlane.xlu0 %17
  %v19 = vsub.f32 %v11, %v18
  %v20 = vmul.f32 %v19, 1.442695
  %v21 = vpow.pop %v20
  %v22 = vsel %vm15, %v21, 0.0
  %23 = vadd.xlane.f32.xlu0 %v22
  %v24 = vpop.xlane.xlu0 %23
  %v25 = vlog2.pop %v24
  %v26 = vmul.f32 %v25, 0.6931472
  %27 = vset.pattern.permute.xlu0 0
  %28 = vperm.xlu0 %27, %v12
  %v29 = vpop.permute.xlu0 %28
  %vm30 = vcmp.eq.s32.totalorder %v14, %v29
  %v31 = vsel %vm30, %v19, 0.0
  %vm32 = vcmask 7168
  %v33 = vsel %vm32, %v26, 0.0
  %34 = vadd.xlane.f32.xlu0 %v33
  %v35 = vpop.xlane.xlu0 %34
  %v36 = vrot.slane %v35, 4
  %v37 = vadd.f32 %v35, %v36
  %v38 = vrot.slane %v37, 2
  %v39 = vadd.f32 %v37, %v38
  %v40 = vrot.slane %v39, 1
  %v41 = vadd.f32 %v39, %v40
  %s42 = vtos %v41
  %v43 = vsel %vm15, %v31, 0.0
  %44 = vadd.xlane.f32.xlu0 %v43
  %v45 = vpop.xlane.xlu0 %44
  %v46 = vrot.slane %v45, 4
  %v47 = vadd.f32 %v45, %v46
  %v48 = vrot.slane %v47, 2
  %v49 = vadd.f32 %v47, %v48
  %v50 = vrot.slane %v49, 1
  %v51 = vadd.f32 %v49, %v50
  %s52 = vtos %v51
  %s53 = ssub.f32 %s42, %s52
  %55 = vrot.lane.b32.xlu0 %v19, 127
  %v56 = vpop.permute.xlu0 %55
  %v58 = vsub.f32 %v19, %v56
  %vm59 = vcmp.ge.s32.totalorder %v14, %v29
  %v60 = vsel %vm59, -1.0, 1.0
  %v61 = vmul.f32 %v58, %v60
  %v62 = vadd.f32 %v61, 2.0
  %v63 = vmax.f32 %v62, 0.0
  %vm64 = vcmask 818176
  %v65 = vsel %vm64, %v63, 0.0
  %66 = vadd.xlane.f32.xlu0 %v65
  %v67 = vpop.xlane.xlu0 %66
  %v68 = vrot.slane %v67, 4
  %v69 = vadd.f32 %v67, %v68
  %v70 = vrot.slane %v69, 2
  %v71 = vadd.f32 %v69, %v70
  %v72 = vrot.slane %v71, 1
  %v73 = vadd.f32 %v71, %v72
  %s74 = vtos %v73
  %s75 = sadd.f32 %s74, 16.0
  %vm76 = vcmp.eq.s32.totalorder %v14, 0
  %vm77 = vcmp.eq.s32.totalorder %v14, 1
  %v78 = vstv %s75
  %v79 = vsel %vm77, %v78, 0.0
  %v80 = vstv %s53
  %v81 = vsel %vm76, %v80, %v79
  %82 = vst [vmem:[%s2] sm:$0x1] %v81
  // Predicated region
  $region10: #{loss_func.1} parent=0 // pred_check
    _
  $region11: #{loss_func.1} parent=0 // pred_check_branch
    %84 = sbr.rel (0) target = $region13
  $region12: #{loss_func.1} parent=0 // pred_region
    _
  $region13: #{loss_func.1} parent=0 // pred_fallthru
    _
  // Predicated region
  $region14: #{loss_func.1} parent=0 // pred_check
    _
  $region15: #{loss_func.1} parent=0 // pred_check_branch
    %86 = sbr.rel (0) target = $region17
  $region16: #{loss_func.1} parent=0 // pred_region
    _
  $region17: #{loss_func.1} parent=0 // pred_fallthru
    _

</llo_original>
